<compile_context>
chip_gen: v7x
topology: tpu7x:2x2x1
jax: 0.10.0
libtpu: 0.0.40
codegen_flags: <defaults>
</compile_context>

<pallas_src>
import math
import numpy as np
import jax
import jax.numpy as jnp
from jax.experimental import pallas as pl
from jax.experimental.pallas import tpu as pltpu

RMS_EPS = float(np.finfo(np.float32).eps)  # nn.RMSNorm default eps for float32


# ----------------------------------------------------------------------------
# Parameter construction (PyTorch-equivalent raw weights + rotary tables)
# ----------------------------------------------------------------------------
def init_params(key, d_model, n_heads, d_ff, max_seq_len):
    dk = d_model // n_heads
    assert dk % 4 == 0, "head dim must be divisible by 4 (Rotary construction)"
    assert max_seq_len >= n_heads, "head-indexed rotary needs max_seq_len >= n_heads"
    k1, k2, k3, k4 = jax.random.split(key, 4)
    # nn.Linear weights are (out, in)
    wqkv = 0.02 * jax.random.normal(k1, (3 * d_model, d_model), jnp.float32)
    wo = 0.02 * jax.random.normal(k2, (d_model, d_model), jnp.float32)
    w1 = 0.02 * jax.random.normal(k3, (d_ff, d_model), jnp.float32)
    w2 = 0.02 * jax.random.normal(k4, (d_model, d_ff), jnp.float32)
    g1 = jnp.ones((d_model,), jnp.float32)
    g2 = jnp.ones((d_model,), jnp.float32)

    # Rotary tables exactly as in the PyTorch module.
    angular_freq = (1.0 / 10000.0) ** jnp.linspace(0.0, 1.0, dk // 4, dtype=jnp.float32)
    angular_freq = jnp.concatenate([angular_freq, jnp.zeros((dk // 4,), jnp.float32)])
    t = jnp.arange(max_seq_len, dtype=jnp.float32)
    theta = jnp.einsum("i,j->ij", t, angular_freq)          # (max_seq_len, dk//2)
    return dict(wqkv=wqkv, wo=wo, w1=w1, w2=w2, g1=g1, g2=g2,
                cos=jnp.cos(theta), sin=jnp.sin(theta))


# ----------------------------------------------------------------------------
# Offline weight preparation: fold rotary + 1/sqrt(dk) into wqkv, transpose for
# right-multiplication, pad d_ff to a multiple of 128, optional bf16 cast.
# ----------------------------------------------------------------------------
def prepare_params(params, n_heads, compute_dtype=jnp.bfloat16):
    wqkv, wo, w1, w2 = params["wqkv"], params["wo"], params["w1"], params["w2"]
    g1, g2, cos, sin = params["g1"], params["g2"], params["cos"], params["sin"]
    D = wo.shape[0]
    d_ff = w1.shape[0]
    H = n_heads
    dk = D // H
    dk2 = dk // 2
    assert H * dk == D and cos.shape[0] >= H
    d_ffp = ((d_ff + 127) // 128) * 128

    wqkv_t = wqkv.T                           # (D, 3D): x @ wqkv_t == qkv(x)
    wq = wqkv_t[:, :D].reshape(D, H, dk)
    wk = wqkv_t[:, D:2 * D].reshape(D, H, dk)
    wv = wqkv_t[:, 2 * D:].reshape(D, H, dk)

    c = cos[:H]                               # (H, dk2) -- angle indexed by HEAD (bug-compatible)
    s = sin[:H]

    def fold_rot(w):                          # exact fold of the per-head rotation
        a, b = w[..., :dk2], w[..., dk2:]
        return jnp.concatenate([a * c[None] + b * s[None],
                                -a * s[None] + b * c[None]], axis=-1)

    wq = fold_rot(wq) * (1.0 / math.sqrt(dk))  # also fold the attention score scale into Q
    wk = fold_rot(wk)

    # Heads kept DENSE (no per-head 128-lane padding).
    wqkv_f = jnp.concatenate([wq.reshape(D, D), wk.reshape(D, D), wv.reshape(D, D)], axis=1)

    w1_p = jnp.pad(w1.T, ((0, 0), (0, d_ffp - d_ff)))   # (D, d_ffp)
    w2_p = jnp.pad(w2.T, ((0, d_ffp - d_ff), (0, 0)))   # (d_ffp, D)

    return dict(
        wqkv=wqkv_f.astype(compute_dtype),    # (D, 3D)
        wo=wo.T.astype(compute_dtype),        # (D, D), rows head-major
        w1=w1_p.astype(compute_dtype),
        w2=w2_p.astype(compute_dtype),
        g1=g1.reshape(1, D).astype(jnp.float32),
        g2=g2.reshape(1, D).astype(jnp.float32),
        n_heads=H, d_k=dk, d_ff_pad=d_ffp,
        compute_dtype=compute_dtype,
    )


def _vmem_limit_bytes(frac=0.85, fallback=64 * 2**20):
    """Generation-aware VMEM scope: ~85% of physical capacity (review item)."""
    try:
        return int(frac * int(pltpu.get_tpu_info().vmem_capacity_bytes))
    except Exception:
        return fallback


# ----------------------------------------------------------------------------
# Pallas kernels + wrapper
# ----------------------------------------------------------------------------
def transformer_block(x, prep, q_tile=None, kv_chunk=None, ff_chunk=None):
    """x: (B, T, D) float32; prep: output of prepare_params."""
    B, T, D = x.shape
    H, dk = prep["n_heads"], prep["d_k"]
    d_ffp = prep["d_ff_pad"]
    cdt = prep["compute_dtype"]
    wqkv, wo, w1, w2 = prep["wqkv"], prep["wo"], prep["w1"], prep["w2"]
    g1, g2 = prep["g1"], prep["g2"]

    tq = q_tile or min(T, 256)          # sequence / query tile
    kvc = kv_chunk or min(T, 512)       # flash KV chunk
    ffc = ff_chunk or min(d_ffp, 512)   # FFN d_ff streaming chunk
    assert D % 128 == 0 and H * dk == D
    assert T % tq == 0 and tq % 8 == 0
    assert T % kvc == 0 and kvc % 8 == 0
    assert d_ffp % ffc == 0 and ffc % 128 == 0
    nT = T // tq
    n_ffc = d_ffp // ffc

    vmem_limit = _vmem_limit_bytes()
    cparams = pltpu.CompilerParams(dimension_semantics=("parallel", "parallel"),
                                   vmem_limit_bytes=vmem_limit)

    # ---------------- kernel 1: RMSNorm1 + fused QKV projection ----------------
    # Rotary and 1/sqrt(dk) already folded into the weights; output emitted
    # directly in the compute dtype (no f32 + bf16 double copy).
    def qkv_kernel(x_ref, wqkv_ref, g1_ref, q_ref, k_ref, v_ref):
        xb = x_ref[0]                                                  # (tq, D) f32
        h = xb * jax.lax.rsqrt(jnp.mean(xb * xb, -1, keepdims=True) + RMS_EPS) * g1_ref[...]
        qkv = jnp.dot(h.astype(cdt), wqkv_ref[...], preferred_element_type=cdt)
        q_ref[0] = qkv[:, :D]
        k_ref[0] = qkv[:, D:2 * D]
        v_ref[0] = qkv[:, 2 * D:]

    q, k, v = pl.pallas_call(
        qkv_kernel,
        out_shape=(jax.ShapeDtypeStruct((B, T, D), cdt),) * 3,
        grid_spec=pltpu.PrefetchScalarGridSpec(
            num_scalar_prefetch=0,
            grid=(B, nT),
            in_specs=[
                pl.BlockSpec((1, tq, D), lambda b, i: (b, i, 0)),
                pl.BlockSpec(wqkv.shape, lambda b, i: (0, 0)),   # resident weight
                pl.BlockSpec(g1.shape, lambda b, i: (0, 0)),
            ],
            out_specs=[pl.BlockSpec((1, tq, D), lambda b, i: (b, i, 0))] * 3,
        ),
        compiler_params=cparams,
    )(x, wqkv, g1)

    # -------- kernel 2: flash attention over Q tiles + w_o + residual ----------
    def attn_kernel(q_ref, k_ref, v_ref, x_ref, wo_ref, o_ref):
        qi = pl.program_id(1)
        # Causal chunk skipping: only KV chunks intersecting the mask are visited.
        kv_hi = (qi * tq + tq + kvc - 1) // kvc
        row = qi * tq + jax.lax.broadcasted_iota(jnp.int32, (tq, 1), 0)
        col_base = jax.lax.broadcasted_iota(jnp.int32, (tq, kvc), 1)   # hoisted once
        q_t = q_ref[0]                                                 # (tq, D) cdt

        def body(c, carry):
            off = pl.multiple_of(c * kvc, kvc)
            kc = k_ref[0, pl.ds(off, kvc), :]        # (kvc, D): one load per chunk,
            vc = v_ref[0, pl.ds(off, kvc), :]        # shared by all heads
            mask = row >= (c * kvc + col_base)       # mask hoisted out of head loop
            new = []
            for hh in range(H):                      # static; value-level head slices
                m, l, acc = carry[hh]
                hs = slice(hh * dk, (hh + 1) * dk)
                s = jax.lax.dot_general(q_t[:, hs], kc[:, hs], (((1,), (1,)), ((), ())),
                                        preferred_element_type=jnp.float32)
                s = jnp.where(mask, s, -jnp.inf)
                m_new = jnp.maximum(m, jnp.max(s, axis=-1, keepdims=True))
                alpha = jnp.exp(m - m_new)
                p = jnp.exp(s - m_new)
                l_new = alpha * l + jnp.sum(p, axis=-1, keepdims=True)
                acc_new = alpha * acc + jnp.dot(p.astype(cdt), vc[:, hs],
                                                preferred_element_type=jnp.float32)
                new.append((m_new, l_new, acc_new))
            return tuple(new)

        init = tuple((jnp.full((tq, 1), -jnp.inf, jnp.float32),
                      jnp.zeros((tq, 1), jnp.float32),
                      jnp.zeros((tq, dk), jnp.float32)) for _ in range(H))
        # NOTE: the KV loop MUST start at chunk 0 (chunk 0 always contains an
        # unmasked column for every query row), so m is finite before any
        # alpha = exp(m - m_new) is evaluated with m = -inf.
        final = jax.lax.fori_loop(0, kv_hi, body, init)

        head_outs = [(acc * pl.reciprocal(l, approx=False)).astype(cdt)
                     for (_, l, acc) in final]
        attn_out = jnp.concatenate(head_outs, axis=1)                  # (tq, D) head-major
        attn_proj = jnp.dot(attn_out, wo_ref[...],                     # one wide WO matmul
                            preferred_element_type=jnp.float32)
        o_ref[0] = x_ref[0] + attn_proj                                # residual 1

    x1 = pl.pallas_call(
        attn_kernel,
        out_shape=jax.ShapeDtypeStruct((B, T, D), jnp.float32),
        grid_spec=pltpu.PrefetchScalarGridSpec(
            num_scalar_prefetch=0,
            grid=(B, nT),
            in_specs=[
                pl.BlockSpec((1, tq, D), lambda b, i: (b, i, 0)),   # Q tile
                pl.BlockSpec((1, T, D), lambda b, i: (b, 0, 0)),    # K (resident per batch)
                pl.BlockSpec((1, T, D), lambda b, i: (b, 0, 0)),    # V (resident per batch)
                pl.BlockSpec((1, tq, D), lambda b, i: (b, i, 0)),   # x tile (residual)
                pl.BlockSpec(wo.shape, lambda b, i: (0, 0)),        # resident weight
            ],
            out_specs=pl.BlockSpec((1, tq, D), lambda b, i: (b, i, 0)),
        ),
        compiler_params=cparams,
    )(q, k, v, x, wo)

    # -------- kernel 3: RMSNorm2 + FFN (SiLU), d_ff streamed, + residual --------
    def ffn_kernel(x_ref, w1_ref, w2_ref, g2_ref, o_ref):
        xb = x_ref[0]                                                  # (tq, D) f32
        h2 = (xb * jax.lax.rsqrt(jnp.mean(xb * xb, -1, keepdims=True) + RMS_EPS)
              * g2_ref[...]).astype(cdt)

        def body(c, ff):
            off = pl.multiple_of(c * ffc, 128)
            z = jnp.dot(h2, w1_ref[:, pl.ds(off, ffc)],
                        preferred_element_type=jnp.float32)           # (tq, ffc) f32
            z = z * jax.nn.sigmoid(z)                                  # SiLU in f32
            return ff + jnp.dot(z.astype(cdt), w2_ref[pl.ds(off, ffc), :],
                                preferred_element_type=jnp.float32)

        ff = jax.lax.fori_loop(0, n_ffc, body, jnp.zeros((tq, D), jnp.float32))
        o_ref[0] = xb + ff                                             # residual 2

    out = pl.pallas_call(
        ffn_kernel,
        out_shape=jax.ShapeDtypeStruct((B, T, D), jnp.float32),
        grid_spec=pltpu.PrefetchScalarGridSpec(
            num_scalar_prefetch=0,
            grid=(B, nT),
            in_specs=[
                pl.BlockSpec((1, tq, D), lambda b, i: (b, i, 0)),
                pl.BlockSpec(w1.shape, lambda b, i: (0, 0)),        # resident weight
                pl.BlockSpec(w2.shape, lambda b, i: (0, 0)),        # resident weight
                pl.BlockSpec(g2.shape, lambda b, i: (0, 0)),
            ],
            out_specs=pl.BlockSpec((1, tq, D), lambda b, i: (b, i, 0)),
        ),
        compiler_params=cparams,
    )(x1, w1, w2, g2)
    return out


# ----------------------------------------------------------------------------
# Pure-JAX reference mirroring the PyTorch forward (eval mode, f32)
# ----------------------------------------------------------------------------
def reference(x, p, n_heads):
    B, T, D = x.shape
    H = n_heads
    dk = D // H
    dk2 = dk // 2

    def rms(v, g):
        return v * jax.lax.rsqrt(jnp.mean(v * v, -1, keepdims=True) + RMS_EPS) * g

    h = rms(x, p["g1"])
    qkv = h @ p["wqkv"].T
    qkv = qkv.reshape(B, T, 3, H, dk).transpose(2, 0, 3, 1, 4)
    Q, K, V = qkv[0], qkv[1], qkv[2]                     # (B, H, T, dk)

    cos = p["cos"][:H][None, :, None, :]                 # head-indexed (bug-compatible)
    sin = p["sin"][:H][None, :, None, :]

    def rot(z):
        z1, z2 = z[..., :dk2], z[..., dk2:]
        return jnp.concatenate([z1 * cos + z2 * sin, -z1 * sin + z2 * cos], axis=-1)

    Q, K = rot(Q), rot(K)
    s = jnp.einsum("bhqd,bhkd->bhqk", Q, K) / math.sqrt(dk)
    mask = jnp.tril(jnp.ones((T, T), bool))
    s = jnp.where(mask, s, -jnp.inf)
    pattn = jax.nn.softmax(s, axis=-1)
    a = jnp.einsum("bhqk,bhkd->bhqd", pattn, V).transpose(0, 2, 1, 3).reshape(B, T, D)
    x1 = x + a @ p["wo"].T

    h2 = rms(x1, p["g2"])
    z = h2 @ p["w1"].T
    z = z * jax.nn.sigmoid(z)
    return x1 + z @ p["w2"].T


if __name__ == "__main__":
    # Small but lane/sublane-aligned shapes; tiles chosen to exercise Q-tiling,
    # the dynamic causal KV loop and the streamed FFN loop.
    B, T = 2, 32
    d_model, n_heads, d_ff, max_seq_len = 128, 4, 256, 64

    key = jax.random.PRNGKey(0)
    kx, kp = jax.random.split(key)
    x = jax.random.normal(kx, (B, T, d_model), jnp.float32)
    params = init_params(kp, d_model, n_heads, d_ff, max_seq_len)
    ref = reference(x, params, n_heads)

    # f32 path: validation of the exact semantics of the PyTorch module.
    prep32 = prepare_params(params, n_heads, compute_dtype=jnp.float32)
    out32 = jax.block_until_ready(
        transformer_block(x, prep32, q_tile=8, kv_chunk=16, ff_chunk=128))
    np.testing.assert_allclose(np.asarray(out32), np.asarray(ref), rtol=1e-4, atol=1e-4)

    # bf16 matmul operands / weights with f32 accumulation: the default MXU path.
    prep16 = prepare_params(params, n_heads)          # compute_dtype defaults to bf16
    out16 = jax.block_until_ready(
        transformer_block(x, prep16, q_tile=8, kv_chunk=16, ff_chunk=128))
    np.testing.assert_allclose(np.asarray(out16), np.asarray(ref), rtol=2e-2, atol=2e-2)

    print("KERNEL_OK")
</pallas_src>

<mosaic_0001>
module attributes {stable_mosaic.version = 11 : i64} {
  func.func @qkv_kernel(%arg0: i32, %arg1: i32, %arg2: memref<1x8x128xf32, #tpu.memory_space<vmem>>, %arg3: memref<128x384xf32, #tpu.memory_space<vmem>>, %arg4: memref<1x128xf32, #tpu.memory_space<vmem>>, %arg5: memref<1x8x128xf32, #tpu.memory_space<vmem>>, %arg6: memref<1x8x128xf32, #tpu.memory_space<vmem>>, %arg7: memref<1x8x128xf32, #tpu.memory_space<vmem>>) attributes {dimension_semantics = [#tpu.dimension_semantics<parallel>, #tpu.dimension_semantics<parallel>], iteration_bounds = array<i64: 2, 4>, scalar_prefetch = 0 : i64, scratch_operands = 0 : i64, tpu.core_type = #tpu.core_type<tc>, window_params = [{transform_indices = @transform_0, window_bounds = array<i64: 1, 8, 128>}, {pipeline_mode = #tpu.pipeline_mode<synchronous>, transform_indices = @transform_1, window_bounds = array<i64: 128, 384>}, {pipeline_mode = #tpu.pipeline_mode<synchronous>, transform_indices = @transform_2, window_bounds = array<i64: 1, 128>}, {transform_indices = @transform_3, window_bounds = array<i64: 1, 8, 128>}, {transform_indices = @transform_4, window_bounds = array<i64: 1, 8, 128>}, {transform_indices = @transform_5, window_bounds = array<i64: 1, 8, 128>}]} {
    %c0 = arith.constant 0 : index
    %c0_0 = arith.constant 0 : index
    %c0_1 = arith.constant 0 : index
    %0 = vector.load %arg2[%c0, %c0_0, %c0_1] : memref<1x8x128xf32, #tpu.memory_space<vmem>>, vector<1x8x128xf32>
    %1 = vector.shape_cast %0 : vector<1x8x128xf32> to vector<8x128xf32>
    %2 = arith.mulf %1, %1 : vector<8x128xf32>
    %cst = arith.constant dense<0.000000e+00> : vector<8xf32>
    %3 = vector.multi_reduction <add>, %2, %cst [1] : vector<8x128xf32> to vector<8xf32>
    %4 = vector.shape_cast %3 : vector<8xf32> to vector<8x1xf32>
    %cst_2 = arith.constant 1.280000e+02 : f32
    %5 = vector.broadcast %cst_2 : f32 to vector<8x1xf32>
    %6 = arith.divf %4, %5 : vector<8x1xf32>
    %cst_3 = arith.constant 1.1920929E-7 : f32
    %7 = vector.broadcast %cst_3 : f32 to vector<8x1xf32>
    %8 = arith.addf %6, %7 : vector<8x1xf32>
    %9 = math.rsqrt %8 : vector<8x1xf32>
    %10 = vector.broadcast %9 : vector<8x1xf32> to vector<8x128xf32>
    %11 = arith.mulf %1, %10 : vector<8x128xf32>
    %c0_4 = arith.constant 0 : index
    %c0_5 = arith.constant 0 : index
    %12 = vector.load %arg4[%c0_4, %c0_5] : memref<1x128xf32, #tpu.memory_space<vmem>>, vector<1x128xf32>
    %13 = vector.broadcast %12 : vector<1x128xf32> to vector<8x128xf32>
    %14 = arith.mulf %11, %13 : vector<8x128xf32>
    %c0_6 = arith.constant 0 : index
    %c0_7 = arith.constant 0 : index
    %15 = vector.load %arg3[%c0_6, %c0_7] : memref<128x384xf32, #tpu.memory_space<vmem>>, vector<128x384xf32>
    %cst_8 = arith.constant dense<0.000000e+00> : vector<8x384xf32>
    %16 = tpu.matmul %14, %15, %cst_8 {dimension_numbers = #tpu.dot_dimension_numbers<[1], [0], [0], [1], [0, 0, 1, 1], [], []>} : vector<8x128xf32>, vector<128x384xf32>, vector<8x384xf32> -> vector<8x384xf32>
    %17 = vector.extract_strided_slice %16 {offsets = [0, 0], sizes = [8, 128], strides = [1, 1]} : vector<8x384xf32> to vector<8x128xf32>
    %c0_9 = arith.constant 0 : index
    %c0_10 = arith.constant 0 : index
    %c0_11 = arith.constant 0 : index
    %18 = vector.load %arg5[%c0_9, %c0_10, %c0_11] : memref<1x8x128xf32, #tpu.memory_space<vmem>>, vector<1x8x128xf32>
    %19 = vector.shape_cast %18 : vector<1x8x128xf32> to vector<8x128xf32>
    %20 = vector.shape_cast %17 : vector<8x128xf32> to vector<1x8x128xf32>
    tpu.vector_store %arg5[%c0_9, %c0_10, %c0_11], %20 {strides = array<i32>} : memref<1x8x128xf32, #tpu.memory_space<vmem>>, vector<1x8x128xf32>,
    %21 = vector.extract_strided_slice %16 {offsets = [0, 128], sizes = [8, 128], strides = [1, 1]} : vector<8x384xf32> to vector<8x128xf32>
    %c0_12 = arith.constant 0 : index
    %c0_13 = arith.constant 0 : index
    %c0_14 = arith.constant 0 : index
    %22 = vector.load %arg6[%c0_12, %c0_13, %c0_14] : memref<1x8x128xf32, #tpu.memory_space<vmem>>, vector<1x8x128xf32>
    %23 = vector.shape_cast %22 : vector<1x8x128xf32> to vector<8x128xf32>
    %24 = vector.shape_cast %21 : vector<8x128xf32> to vector<1x8x128xf32>
    tpu.vector_store %arg6[%c0_12, %c0_13, %c0_14], %24 {strides = array<i32>} : memref<1x8x128xf32, #tpu.memory_space<vmem>>, vector<1x8x128xf32>,
    %25 = vector.extract_strided_slice %16 {offsets = [0, 256], sizes = [8, 128], strides = [1, 1]} : vector<8x384xf32> to vector<8x128xf32>
    %c0_15 = arith.constant 0 : index
    %c0_16 = arith.constant 0 : index
    %c0_17 = arith.constant 0 : index
    %26 = vector.load %arg7[%c0_15, %c0_16, %c0_17] : memref<1x8x128xf32, #tpu.memory_space<vmem>>, vector<1x8x128xf32>
    %27 = vector.shape_cast %26 : vector<1x8x128xf32> to vector<8x128xf32>
    %28 = vector.shape_cast %25 : vector<8x128xf32> to vector<1x8x128xf32>
    tpu.vector_store %arg7[%c0_15, %c0_16, %c0_17], %28 {strides = array<i32>} : memref<1x8x128xf32, #tpu.memory_space<vmem>>, vector<1x8x128xf32>,
    return
  }
  func.func @transform_0(%arg0: i32, %arg1: i32) -> (i32, i32, i32) {
    %c0_i32 = arith.constant 0 : i32
    %c0_i32_0 = arith.constant 0 : i32
    return %arg0, %arg1, %c0_i32 : i32, i32, i32
  }
  func.func @transform_1(%arg0: i32, %arg1: i32) -> (i32, i32) {
    %c0_i32 = arith.constant 0 : i32
    %c0_i32_0 = arith.constant 0 : i32
    %c0_i32_1 = arith.constant 0 : i32
    return %c0_i32, %c0_i32_0 : i32, i32
  }
  func.func @transform_2(%arg0: i32, %arg1: i32) -> (i32, i32) {
    %c0_i32 = arith.constant 0 : i32
    %c0_i32_0 = arith.constant 0 : i32
    %c0_i32_1 = arith.constant 0 : i32
    return %c0_i32, %c0_i32_0 : i32, i32
  }
  func.func @transform_3(%arg0: i32, %arg1: i32) -> (i32, i32, i32) {
    %c0_i32 = arith.constant 0 : i32
    %c0_i32_0 = arith.constant 0 : i32
    return %arg0, %arg1, %c0_i32 : i32, i32, i32
  }
  func.func @transform_4(%arg0: i32, %arg1: i32) -> (i32, i32, i32) {
    %c0_i32 = arith.constant 0 : i32
    %c0_i32_0 = arith.constant 0 : i32
    return %arg0, %arg1, %c0_i32 : i32, i32, i32
  }
  func.func @transform_5(%arg0: i32, %arg1: i32) -> (i32, i32, i32) {
    %c0_i32 = arith.constant 0 : i32
    %c0_i32_0 = arith.constant 0 : i32
    return %arg0, %arg1, %c0_i32 : i32, i32, i32
  }
}

</mosaic_0001>

<llo_original>
// kernel: tpu_custom_call.1
$region0: #{tpu_custom_call.1}
  #allocation0 [shape = 'u32[]', space=smem, size = 0x4, offset = 0x4, fixed_abs, tag = 'smem constant byte address 0x4 - core index']
  #allocation1 [shape = 'u32[144,128]{1,0:T(1,128)}', space=vmem, size = 0x12000, scoped, tag = 'internal scratch']
  %s0 = inlined_call_operand.hbm [shape: f32[2,32,128], index: 0, kind: input, shape index: {}]
  %s1 = inlined_call_operand.hbm [shape: f32[128,384], index: 1, kind: input, shape index: {}]
  %s2 = inlined_call_operand.hbm [shape: f32[1,128], index: 2, kind: input, shape index: {}]
  %s3 = inlined_call_operand.hbm [shape: f32[2,32,128], index: 3, kind: output, shape index: {0}]
  %s4 = inlined_call_operand.hbm [shape: f32[2,32,128], index: 4, kind: output, shape index: {1}]
  %s5 = inlined_call_operand.hbm [shape: f32[2,32,128], index: 5, kind: output, shape index: {2}]
  %6 = xla_tuple %s3, %s4, %s5
  %s7 = sld [smem:[#allocation0]]
  $region73: #{tpu_custom_call.1} parent=0
    _
  %s9 = ssub.s32 1, %s7
  %s10 = scalar_select 0, %s9, %s7
  $region1: #{tpu_custom_call.1} parent=0
    #allocation2 [shape = 'u8[8192]{0}', space=vmem, size = 0x2000, scoped, tag = 'input window, operand 0']
    #allocation3 [shape = 's32[2]{0}', space=sflag, size = 0x8, scoped, tag = 'scoped memory for tpu_custom_call.1']
    #allocation4 [shape = 's32[2]{0}', space=sflag, size = 0x8, scoped, tag = 'scoped memory for tpu_custom_call.1']
    #allocation5 [shape = 'u8[196608]{0}', space=vmem, size = 0x30000, scoped, tag = 'input window, operand 1, single buffered']
    #allocation6 [shape = 's32[1]{0}', space=sflag, size = 0x4, scoped, tag = 'scoped memory for tpu_custom_call.1']
    #allocation7 [shape = 'u8[512]{0}', space=vmem, size = 0x400, scoped, tag = 'input window, operand 2, single buffered']
    #allocation8 [shape = 'u8[8192]{0}', space=vmem, size = 0x2000, scoped, tag = 'output window, operand 0']
    #allocation9 [shape = 'u8[8192]{0}', space=vmem, size = 0x2000, scoped, tag = 'output window, operand 1']
    #allocation10 [shape = 's32[2]{0}', space=sflag, size = 0x8, scoped, tag = 'scoped memory for tpu_custom_call.1']
    #allocation11 [shape = 'u8[8192]{0}', space=vmem, size = 0x2000, scoped, tag = 'output window, operand 2']
    %11 = vsyncpa [#allocation3], 0
    %s12 = scalar_lea.sflag [#allocation3], 1
    %13 = vsyncpa %s12, 0
    %14 = vsyncpa [#allocation6], 0
    %15 = vsyncpa [#allocation4], 0
    %s16 = scalar_lea.sflag [#allocation4], 1
    %17 = vsyncpa %s16, 0
    %18 = vsyncpa [#allocation10], 0
    %s19 = scalar_lea.sflag [#allocation10], 1
    %20 = vsyncpa %s19, 0
    loop: start=0, step=1, limit=10
    $region2: #{tpu_custom_call.1} parent=1 // loop_pre_header
      _
    $region3: #{tpu_custom_call.1} parent=1 // loop_header
      %s22 = sphi 0, %s26
      %p23 = scmp.ge.s32.totalorder %s22, 10
      %s29 = sphi 0, %s41
      %s30 = sphi 0, %s37
      %s31 = sphi 0, %s29
      %s32 = sphi 0, %s30
      %s33 = sphi 0, %s31
      %s34 = sphi 0, %s32
      %s46 = sphi 0, %s48
      %s49 = sphi 0, %s46
      %s50 = sphi 0, %s49
      %s66 = sphi 0, %s50
      %s70 = sphi 0, %s70
      %s72 = sphi 0, %s70
      %s73 = sphi 0, %s72
      %s87 = sphi 0, %s73
      %s91 = sphi 0, %s91
      %s93 = sphi 0, %s91
      %s94 = sphi 0, %s93
      %s108 = sphi 0, %s94
      %s116 = sphi 0, %s118
      %s119 = sphi 0, %s116
      %s120 = sphi 0, %s119
      %s136 = sphi 0, %s120
      %s144 = sphi 0, %s146
      %s147 = sphi 0, %s144
      %s148 = sphi 0, %s147
      %s164 = sphi 0, %s148
      %s172 = sphi 0, %s174
      %s175 = sphi 0, %s172
      %s176 = sphi 0, %s175
      %s192 = sphi 0, %s176
    $region4: #{tpu_custom_call.1} parent=1 // loop_header_branch
      %25 = sbr.rel (%p23) target = $region8
    $region5: #{tpu_custom_call.1} parent=1 // loop_body
      %s27 = ssub.s32 %s22, 1
      %s28 = ssub.s32 %s22, 2
      %s35 = sadd.s32 1, %s30
      %p36 = scmp.ge.s32.totalorder %s35, 4
      %s37 = scalar_select %p36, 0, %s35
      %s38 = sadd.s32 1, %s29
      %s39 = scalar_select %p36, %s38, %s29
      %p40 = scmp.ge.s32.totalorder %s39, 2
      %s41 = scalar_select %p40, 0, %s39
      %s42 = ssub.s32 %s29, %s41
      %s43 = ssub.s32 %s30, %s37
      %s44 = sor.u32 %s42, %s43
      %p45 = scmp.eq.s32.totalorder %s44, 0
      %s47 = sadd.s32 %s46, 1
      %s48 = scalar_select %p45, %s46, %s47
      %p51 = pneg %p45
      %p52 = scmp.eq.s32.totalorder %s22, 7
      %p53 = por %p51, %p52
      %p54 = scmp.ne.s32.totalorder %s46, %s49
      %p55 = scmp.eq.s32.totalorder %s22, 0
      %p56 = por %p54, %p55
      %p57 = scmp.ne.s32.totalorder %s46, %s49
      %p58 = scmp.eq.s32.totalorder %s27, 7
      %p59 = por %p57, %p58
      %p60 = scmp.ne.s32.totalorder %s49, %s50
      %p61 = scmp.eq.s32.totalorder %s27, 0
      %p62 = por %p60, %p61
      %p63 = scmp.ne.s32.totalorder %s49, %s50
      %p64 = scmp.eq.s32.totalorder %s28, 7
      %p65 = por %p63, %p64
      %p67 = scmp.ne.s32.totalorder %s50, %s66
      %p68 = scmp.eq.s32.totalorder %s28, 0
      %p69 = por %p67, %p68
      %s71 = sadd.s32 %s70, 1
      %p74 = scmp.eq.s32.totalorder %s22, 7
      %p75 = scmp.ne.s32.totalorder %s70, %s72
      %p76 = scmp.eq.s32.totalorder %s22, 0
      %p77 = por %p75, %p76
      %p78 = scmp.ne.s32.totalorder %s70, %s72
      %p79 = scmp.eq.s32.totalorder %s27, 7
      %p80 = por %p78, %p79
      %p81 = scmp.ne.s32.totalorder %s72, %s73
      %p82 = scmp.eq.s32.totalorder %s27, 0
      %p83 = por %p81, %p82
      %p84 = scmp.ne.s32.totalorder %s72, %s73
      %p85 = scmp.eq.s32.totalorder %s28, 7
      %p86 = por %p84, %p85
      %p88 = scmp.ne.s32.totalorder %s73, %s87
      %p89 = scmp.eq.s32.totalorder %s28, 0
      %p90 = por %p88, %p89
      %s92 = sadd.s32 %s91, 1
      %p95 = scmp.eq.s32.totalorder %s22, 7
      %p96 = scmp.ne.s32.totalorder %s91, %s93
      %p97 = scmp.eq.s32.totalorder %s22, 0
      %p98 = por %p96, %p97
      %p99 = scmp.ne.s32.totalorder %s91, %s93
      %p100 = scmp.eq.s32.totalorder %s27, 7
      %p101 = por %p99, %p100
      %p102 = scmp.ne.s32.totalorder %s93, %s94
      %p103 = scmp.eq.s32.totalorder %s27, 0
      %p104 = por %p102, %p103
      %p105 = scmp.ne.s32.totalorder %s93, %s94
      %p106 = scmp.eq.s32.totalorder %s28, 7
      %p107 = por %p105, %p106
      %p109 = scmp.ne.s32.totalorder %s94, %s108
      %p110 = scmp.eq.s32.totalorder %s28, 0
      %p111 = por %p109, %p110
      %s112 = ssub.s32 %s29, %s41
      %s113 = ssub.s32 %s30, %s37
      %s114 = sor.u32 %s112, %s113
      %p115 = scmp.eq.s32.totalorder %s114, 0
      %s117 = sadd.s32 %s116, 1
      %s118 = scalar_select %p115, %s116, %s117
      %p121 = pneg %p115
      %p122 = scmp.eq.s32.totalorder %s22, 7
      %p123 = por %p121, %p122
      %p124 = scmp.ne.s32.totalorder %s116, %s119
      %p125 = scmp.eq.s32.totalorder %s22, 0
      %p126 = por %p124, %p125
      %p127 = scmp.ne.s32.totalorder %s116, %s119
      %p128 = scmp.eq.s32.totalorder %s27, 7
      %p129 = por %p127, %p128
      %p130 = scmp.ne.s32.totalorder %s119, %s120
      %p131 = scmp.eq.s32.totalorder %s27, 0
      %p132 = por %p130, %p131
      %p133 = scmp.ne.s32.totalorder %s119, %s120
      %p134 = scmp.eq.s32.totalorder %s28, 7
      %p135 = por %p133, %p134
      %p137 = scmp.ne.s32.totalorder %s120, %s136
      %p138 = scmp.eq.s32.totalorder %s28, 0
      %p139 = por %p137, %p138
      %s140 = ssub.s32 %s29, %s41
      %s141 = ssub.s32 %s30, %s37
      %s142 = sor.u32 %s140, %s141
      %p143 = scmp.eq.s32.totalorder %s142, 0
      %s145 = sadd.s32 %s144, 1
      %s146 = scalar_select %p143, %s144, %s145
      %p149 = pneg %p143
      %p150 = scmp.eq.s32.totalorder %s22, 7
      %p151 = por %p149, %p150
      %p152 = scmp.ne.s32.totalorder %s144, %s147
      %p153 = scmp.eq.s32.totalorder %s22, 0
      %p154 = por %p152, %p153
      %p155 = scmp.ne.s32.totalorder %s144, %s147
      %p156 = scmp.eq.s32.totalorder %s27, 7
      %p157 = por %p155, %p156
      %p158 = scmp.ne.s32.totalorder %s147, %s148
      %p159 = scmp.eq.s32.totalorder %s27, 0
      %p160 = por %p158, %p159
      %p161 = scmp.ne.s32.totalorder %s147, %s148
      %p162 = scmp.eq.s32.totalorder %s28, 7
      %p163 = por %p161, %p162
      %p165 = scmp.ne.s32.totalorder %s148, %s164
      %p166 = scmp.eq.s32.totalorder %s28, 0
      %p167 = por %p165, %p166
      %s168 = ssub.s32 %s29, %s41
      %s169 = ssub.s32 %s30, %s37
      %s170 = sor.u32 %s168, %s169
      %p171 = scmp.eq.s32.totalorder %s170, 0
      %s173 = sadd.s32 %s172, 1
      %s174 = scalar_select %p171, %s172, %s173
      %p177 = pneg %p171
      %p178 = scmp.eq.s32.totalorder %s22, 7
      %p179 = por %p177, %p178
      %p180 = scmp.ne.s32.totalorder %s172, %s175
      %p181 = scmp.eq.s32.totalorder %s22, 0
      %p182 = por %p180, %p181
      %p183 = scmp.ne.s32.totalorder %s172, %s175
      %p184 = scmp.eq.s32.totalorder %s27, 7
      %p185 = por %p183, %p184
      %p186 = scmp.ne.s32.totalorder %s175, %s176
      %p187 = scmp.eq.s32.totalorder %s27, 0
      %p188 = por %p186, %p187
      %p189 = scmp.ne.s32.totalorder %s175, %s176
      %p190 = scmp.eq.s32.totalorder %s28, 7
      %p191 = por %p189, %p190
      %p193 = scmp.ne.s32.totalorder %s176, %s192
      %p194 = scmp.eq.s32.totalorder %s28, 0
      %p195 = por %p193, %p194
      %p196 = scmp.le.s32.totalorder 1, %s22
      %p197 = scmp.lt.s32.totalorder %s22, 9
      %p198 = pnand %p196, %p197
      %p199 = pneg %p198
      // Predicated region
      $region9: #{tpu_custom_call.1} parent=5 // pred_check
        _
      $region10: #{tpu_custom_call.1} parent=5 // pred_check_branch
        %201 = sbr.rel (%p198) target = $region12
      $region11: #{tpu_custom_call.1} parent=5 // pred_region
        %s202 = ssub.s32 %s22, 1
        // Predicated region
        $region13: #{tpu_custom_call.1} parent=11 // pred_check
          %p203 = pneg %p83
        $region14: #{tpu_custom_call.1} parent=11 // pred_check_branch
          %205 = sbr.rel (%p203) target = $region16
        $region15: #{tpu_custom_call.1} parent=11 // pred_region
          %s207 = ssub.s32 6144, 6144
          %208 = vsyncadd [#allocation6], %s207
          %s209 = sshll.u32 [#allocation5], 4
          %s210 = int_to_ptr.vmem [resolvable:$true] %s209
          %215 = dma.hbm_to_vmem [thread:$0]  %s1, 6144, %s210, [#allocation6], 384, 384, 24
        $region16: #{tpu_custom_call.1} parent=11 // pred_fallthru
          _
        // Predicated region
        $region17: #{tpu_custom_call.1} parent=11 // pred_check
          %p216 = pneg %p104
        $region18: #{tpu_custom_call.1} parent=11 // pred_check_branch
          %218 = sbr.rel (%p216) target = $region20
        $region19: #{tpu_custom_call.1} parent=11 // pred_region
          %s220 = ssub.s32 16, 16
          %221 = vsyncadd [#allocation6], %s220
          %s223 = sshll.u32 [#allocation7], 4
          %s224 = int_to_ptr.vmem [resolvable:$true] %s223
          %226 = dma.hbm_to_vmem [thread:$0]  %s2, 16, %s224, [#allocation6]
        $region20: #{tpu_custom_call.1} parent=11 // pred_fallthru
          _
      $region12: #{tpu_custom_call.1} parent=5 // pred_fallthru
        _
      %p227 = scmp.lt.s32.totalorder %s22, 8
      // Predicated region
      $region21: #{tpu_custom_call.1} parent=5 // pred_check
        %p228 = pneg %p227
      $region22: #{tpu_custom_call.1} parent=5 // pred_check_branch
        %230 = sbr.rel (%p228) target = $region24
      $region23: #{tpu_custom_call.1} parent=5 // pred_region
        // Predicated region
        $region25: #{tpu_custom_call.1} parent=23 // pred_check
          %p231 = pneg %p56
        $region26: #{tpu_custom_call.1} parent=23 // pred_check_branch
          %233 = sbr.rel (%p231) target = $region28
        $region27: #{tpu_custom_call.1} parent=23 // pred_region
          %s234 = sand.u32 %s46, 1
          %s235 = scalar_lea.sflag [#allocation3], %s234
          %s236 = sand.u32 %s46, 1
          %s237 = smul.addr %s236, 8
          %s238 = scalar_lea.vmem [#allocation2], %s237
          %s240 = ssub.s32 128, 128
          %241 = vsyncadd %s235, %s240
          %s242 = smul.addr %s29, 4
          %s243 = sadd.s32 %s30, %s242
          %s244 = smul.addr %s243, 128
          %s245 = scalar_lea.hbm %s0, %s244
          %s247 = sshll.u32 %s238, 4
          %s248 = int_to_ptr.vmem [resolvable:$true] %s247
          %250 = dma.hbm_to_vmem [thread:$0]  %s245, 128, %s248, %s235
        $region28: #{tpu_custom_call.1} parent=23 // pred_fallthru
          _
      $region24: #{tpu_custom_call.1} parent=5 // pred_fallthru
        _
      %p251 = scmp.le.s32.totalorder 1, %s22
      %p252 = scmp.lt.s32.totalorder %s22, 9
      %p253 = pnand %p251, %p252
      %p254 = pneg %p253
      // Predicated region
      $region29: #{tpu_custom_call.1} parent=5 // pred_check
        _
      $region30: #{tpu_custom_call.1} parent=5 // pred_check_branch
        %256 = sbr.rel (%p253) target = $region32
      $region31: #{tpu_custom_call.1} parent=5 // pred_region
        %s257 = ssub.s32 %s22, 1
        %s258 = sand.u32 %s49, 1
        %s259 = scalar_lea.sflag [#allocation3], %s258
        %s260 = sand.u32 %s49, 1
        %s261 = smul.addr %s260, 8
        %s262 = scalar_lea.vmem [#allocation2], %s261
        // Predicated region
        $region33: #{tpu_custom_call.1} parent=31 // pred_check
          %p263 = pneg %p62
        $region34: #{tpu_custom_call.1} parent=31 // pred_check_branch
          %265 = sbr.rel (%p263) target = $region36
        $region35: #{tpu_custom_call.1} parent=31 // pred_region
          %266 = dma.done %s259, 128
        $region36: #{tpu_custom_call.1} parent=31 // pred_fallthru
          _
        // Predicated region
        $region37: #{tpu_custom_call.1} parent=31 // pred_check
          %p267 = pneg %p83
        $region38: #{tpu_custom_call.1} parent=31 // pred_check_branch
          %269 = sbr.rel (%p267) target = $region40
        $region39: #{tpu_custom_call.1} parent=31 // pred_region
          %270 = dma.done [#allocation6], 6144
        $region40: #{tpu_custom_call.1} parent=31 // pred_fallthru
          _
        // Predicated region
        $region41: #{tpu_custom_call.1} parent=31 // pred_check
          %p271 = pneg %p104
        $region42: #{tpu_custom_call.1} parent=31 // pred_check_branch
          %273 = sbr.rel (%p271) target = $region44
        $region43: #{tpu_custom_call.1} parent=31 // pred_region
          %274 = dma.done [#allocation6], 16
        $region44: #{tpu_custom_call.1} parent=31 // pred_fallthru
          _
        %s275 = sand.u32 %s49, 1
        %s276 = scalar_lea.sflag [#allocation3], %s275
        %s277 = sand.u32 %s49, 1
        %s278 = smul.addr %s277, 8
        %s279 = scalar_lea.vmem [#allocation2], %s278
        %p280 = pneg %p62
        %p281 = pneg %p59
        %p282 = pneg %p83
        %p283 = pneg %p80
        %p284 = pneg %p104
        %p285 = pneg %p101
        %p286 = pneg %p132
        %p287 = pneg %p129
        %s288 = sand.u32 %s119, 1
        %s289 = scalar_lea.sflag [#allocation4], %s288
        %s290 = sand.u32 %s119, 1
        %s291 = smul.addr %s290, 8
        %s292 = scalar_lea.vmem [#allocation8], %s291
        %p293 = pneg %p160
        %p294 = pneg %p157
        %s295 = sand.u32 %s27, 1
        %s296 = scalar_lea.sflag [#allocation10], %s295
        %s297 = sand.u32 %s147, 1
        %s298 = smul.addr %s297, 8
        %s299 = scalar_lea.vmem [#allocation9], %s298
        %p300 = pneg %p188
        %p301 = pneg %p185
        %s302 = sand.u32 %s27, 1
        %s303 = scalar_lea.sflag [#allocation10], %s302
        %s304 = sand.u32 %s175, 1
        %s305 = smul.addr %s304, 8
        %s306 = scalar_lea.vmem [#allocation11], %s305
        %v307 = vld [vmem:[%s262] sm:$0xff]
        %v308 = vmul.f32 %v307, %v307
        %309 = vadd.xlane.f32.xlu0 %v308
        %v310 = vpop.xlane.xlu0 %309
        %v311 = vrcp.pop 128.0
        %v312 = vmul.f32 %v310, %v311
        %v313 = vadd.f32 %v312, 1.1920929e-07
        %v314 = vrsqrt.pop %v313
        %v315 = vmul.f32 %v307, %v314
        %v316 = vld [vmem:[#allocation7] sm:$0x1]
        %v318 = vlaneseq
        %v319 = vshrl.u32 %v318, 7
        %v320 = vsub.s32 0, %v319
        %v321 = vrot.slane %v316, %v320
        %v323 = vmul.f32 %v315, %v321
        %v324 = vld [vmem:[#allocation5] sm:$0xff]
        %v325 = vld [vmem:[#allocation5 + $0x8] sm:$0xff]
        %v326 = vld [vmem:[#allocation5 + $0x10] sm:$0xff]
        %v327 = vld [vmem:[#allocation5 + $0x18] sm:$0xff]
        %v328 = vld [vmem:[#allocation5 + $0x20] sm:$0xff]
        %v329 = vld [vmem:[#allocation5 + $0x28] sm:$0xff]
        %v330 = vld [vmem:[#allocation5 + $0x30] sm:$0xff]
        %v331 = vld [vmem:[#allocation5 + $0x38] sm:$0xff]
        %v332 = vld [vmem:[#allocation5 + $0x40] sm:$0xff]
        %v333 = vld [vmem:[#allocation5 + $0x48] sm:$0xff]
        %v334 = vld [vmem:[#allocation5 + $0x50] sm:$0xff]
        %v335 = vld [vmem:[#allocation5 + $0x58] sm:$0xff]
        %v336 = vld [vmem:[#allocation5 + $0x60] sm:$0xff]
        %v337 = vld [vmem:[#allocation5 + $0x68] sm:$0xff]
        %v338 = vld [vmem:[#allocation5 + $0x70] sm:$0xff]
        %v339 = vld [vmem:[#allocation5 + $0x78] sm:$0xff]
        %v340 = vld [vmem:[#allocation5 + $0x80] sm:$0xff]
        %v341 = vld [vmem:[#allocation5 + $0x88] sm:$0xff]
        %v342 = vld [vmem:[#allocation5 + $0x90] sm:$0xff]
        %v343 = vld [vmem:[#allocation5 + $0x98] sm:$0xff]
        %v344 = vld [vmem:[#allocation5 + $0xa0] sm:$0xff]
        %v345 = vld [vmem:[#allocation5 + $0xa8] sm:$0xff]
        %v346 = vld [vmem:[#allocation5 + $0xb0] sm:$0xff]
        %v347 = vld [vmem:[#allocation5 + $0xb8] sm:$0xff]
        %v348 = vld [vmem:[#allocation5 + $0xc0] sm:$0xff]
        %v349 = vld [vmem:[#allocation5 + $0xc8] sm:$0xff]
        %v350 = vld [vmem:[#allocation5 + $0xd0] sm:$0xff]
        %v351 = vld [vmem:[#allocation5 + $0xd8] sm:$0xff]
        %v352 = vld [vmem:[#allocation5 + $0xe0] sm:$0xff]
        %v353 = vld [vmem:[#allocation5 + $0xe8] sm:$0xff]
        %v354 = vld [vmem:[#allocation5 + $0xf0] sm:$0xff]
        %v355 = vld [vmem:[#allocation5 + $0xf8] sm:$0xff]
        %v356 = vld [vmem:[#allocation5 + $0x100] sm:$0xff]
        %v357 = vld [vmem:[#allocation5 + $0x108] sm:$0xff]
        %v358 = vld [vmem:[#allocation5 + $0x110] sm:$0xff]
        %v359 = vld [vmem:[#allocation5 + $0x118] sm:$0xff]
        %v360 = vld [vmem:[#allocation5 + $0x120] sm:$0xff]
        %v361 = vld [vmem:[#allocation5 + $0x128] sm:$0xff]
        %v362 = vld [vmem:[#allocation5 + $0x130] sm:$0xff]
        %v363 = vld [vmem:[#allocation5 + $0x138] sm:$0xff]
        %v364 = vld [vmem:[#allocation5 + $0x140] sm:$0xff]
        %v365 = vld [vmem:[#allocation5 + $0x148] sm:$0xff]
        %v366 = vld [vmem:[#allocation5 + $0x150] sm:$0xff]
        %v367 = vld [vmem:[#allocation5 + $0x158] sm:$0xff]
        %v368 = vld [vmem:[#allocation5 + $0x160] sm:$0xff]
        %v369 = vld [vmem:[#allocation5 + $0x168] sm:$0xff]
        %v370 = vld [vmem:[#allocation5 + $0x170] sm:$0xff]
        %v371 = vld [vmem:[#allocation5 + $0x178] sm:$0xff]
        %372 = vmatprep.subr.mxu0 %v325
        %373 = vmatpush1.msra.mxu0 %v324
        %374 = vmatprep.subr.mxu0 %v328
        %375 = vmatpush1.msra.mxu0 %v327
        %376 = vmatprep.subr.mxu0 %v331
        %377 = vmatpush1.msra.mxu0 %v330
        %378 = vmatprep.subr.mxu0 %v334
        %379 = vmatpush1.msra.mxu0 %v333
        %380 = vmatprep.subr.mxu0 %v337
        %381 = vmatpush1.msra.mxu0 %v336
        %382 = vmatprep.subr.mxu0 %v340
        %383 = vmatpush1.msra.mxu0 %v339
        %384 = vmatprep.subr.mxu0 %v343
        %385 = vmatpush1.msra.mxu0 %v342
        %386 = vmatprep.subr.mxu0 %v346
        %387 = vmatpush1.msra.mxu0 %v345
        %388 = vmatprep.subr.mxu0 %v349
        %389 = vmatpush1.msra.mxu0 %v348
        %390 = vmatprep.subr.mxu0 %v352
        %391 = vmatpush1.msra.mxu0 %v351
        %392 = vmatprep.subr.mxu0 %v355
        %393 = vmatpush1.msra.mxu0 %v354
        %394 = vmatprep.subr.mxu0 %v358
        %395 = vmatpush1.msra.mxu0 %v357
        %396 = vmatprep.subr.mxu0 %v361
        %397 = vmatpush1.msra.mxu0 %v360
        %398 = vmatprep.subr.mxu0 %v364
        %399 = vmatpush1.msra.mxu0 %v363
        %400 = vmatprep.subr.mxu0 %v367
        %401 = vmatpush1.msra.mxu0 %v366
        %402 = vmatprep.subr.mxu0 %v370
        %403 = vmatpush1.msra.mxu0 %v369
        %404 = vmatprep.subr.mxu0 0.0
        %405 = vmatpush1.msra.mxu0 0.0
        %406 = vmatprep.subr.mxu0 0.0
        %407 = vmatpush1.msra.mxu0 0.0
        %408 = vmatprep.subr.mxu0 0.0
        %409 = vmatpush1.msra.mxu0 0.0
        %410 = vmatprep.subr.mxu0 0.0
        %411 = vmatpush1.msra.mxu0 0.0
        %412 = vmatprep.subr.mxu0 0.0
        %413 = vmatpush1.msra.mxu0 0.0
        %414 = vmatprep.subr.mxu0 0.0
        %415 = vmatpush1.msra.mxu0 0.0
        %416 = vmatprep.subr.mxu0 0.0
        %417 = vmatpush1.msra.mxu0 0.0
        %418 = vmatprep.subr.mxu0 0.0
        %419 = vmatpush1.msra.mxu0 0.0
        %420 = vmatprep.subr.mxu0 0.0
        %421 = vmatpush1.msra.mxu0 0.0
        %422 = vmatprep.subr.mxu0 0.0
        %423 = vmatpush1.msra.mxu0 0.0
        %424 = vmatprep.subr.mxu0 0.0
        %425 = vmatpush1.msra.mxu0 0.0
        %426 = vmatprep.subr.mxu0 0.0
        %427 = vmatpush1.msra.mxu0 0.0
        %428 = vmatprep.subr.mxu0 0.0
        %429 = vmatpush1.msra.mxu0 0.0
        %430 = vmatprep.subr.mxu0 0.0
        %431 = vmatpush1.msra.mxu0 0.0
        %432 = vmatprep.subr.mxu0 0.0
        %433 = vmatpush1.msra.mxu0 0.0
        %434 = vmatprep.subr.mxu0 0.0
        %435 = vmatpush1.msra.mxu0 0.0
        %436 = vmatprep.mubr.f32.mxu0 0.0
        %437 = vmatmul.mubr.f32.gmra.mrb[0].mxu0 %v323
        %v438 = vpop.f32.mrb[0].mxu0
        %v439 = vadd.f32 0.0, %v438
        %v440 = vpop.f32.mrb[0].mxu0
        %v441 = vadd.f32 0.0, %v440
        %442 = vdwg.mxu0
        %443 = vmatprep.subr.mxu0 0.0
        %444 = vmatpush1.msra.mxu0 %v326
        %445 = vmatprep.subr.mxu0 0.0
        %446 = vmatpush1.msra.mxu0 %v329
        %447 = vmatprep.subr.mxu0 0.0
        %448 = vmatpush1.msra.mxu0 %v332
        %449 = vmatprep.subr.mxu0 0.0
        %450 = vmatpush1.msra.mxu0 %v335
        %451 = vmatprep.subr.mxu0 0.0
        %452 = vmatpush1.msra.mxu0 %v338
        %453 = vmatprep.subr.mxu0 0.0
        %454 = vmatpush1.msra.mxu0 %v341
        %455 = vmatprep.subr.mxu0 0.0
        %456 = vmatpush1.msra.mxu0 %v344
        %457 = vmatprep.subr.mxu0 0.0
        %458 = vmatpush1.msra.mxu0 %v347
        %459 = vmatprep.subr.mxu0 0.0
        %460 = vmatpush1.msra.mxu0 %v350
        %461 = vmatprep.subr.mxu0 0.0
        %462 = vmatpush1.msra.mxu0 %v353
        %463 = vmatprep.subr.mxu0 0.0
        %464 = vmatpush1.msra.mxu0 %v356
        %465 = vmatprep.subr.mxu0 0.0
        %466 = vmatpush1.msra.mxu0 %v359
        %467 = vmatprep.subr.mxu0 0.0
        %468 = vmatpush1.msra.mxu0 %v362
        %469 = vmatprep.subr.mxu0 0.0
        %470 = vmatpush1.msra.mxu0 %v365
        %471 = vmatprep.subr.mxu0 0.0
        %472 = vmatpush1.msra.mxu0 %v368
        %473 = vmatprep.subr.mxu0 0.0
        %474 = vmatpush1.msra.mxu0 %v371
        %475 = vmatprep.subr.mxu0 0.0
        %476 = vmatpush1.msra.mxu0 0.0
        %477 = vmatprep.subr.mxu0 0.0
        %478 = vmatpush1.msra.mxu0 0.0
        %479 = vmatprep.subr.mxu0 0.0
        %480 = vmatpush1.msra.mxu0 0.0
        %481 = vmatprep.subr.mxu0 0.0
        %482 = vmatpush1.msra.mxu0 0.0
        %483 = vmatprep.subr.mxu0 0.0
        %484 = vmatpush1.msra.mxu0 0.0
        %485 = vmatprep.subr.mxu0 0.0
        %486 = vmatpush1.msra.mxu0 0.0
        %487 = vmatprep.subr.mxu0 0.0
        %488 = vmatpush1.msra.mxu0 0.0
        %489 = vmatprep.subr.mxu0 0.0
        %490 = vmatpush1.msra.mxu0 0.0
        %491 = vmatprep.subr.mxu0 0.0
        %492 = vmatpush1.msra.mxu0 0.0
        %493 = vmatprep.subr.mxu0 0.0
        %494 = vmatpush1.msra.mxu0 0.0
        %495 = vmatprep.subr.mxu0 0.0
        %496 = vmatpush1.msra.mxu0 0.0
        %497 = vmatprep.subr.mxu0 0.0
        %498 = vmatpush1.msra.mxu0 0.0
        %499 = vmatprep.subr.mxu0 0.0
        %500 = vmatpush1.msra.mxu0 0.0
        %501 = vmatprep.subr.mxu0 0.0
        %502 = vmatpush1.msra.mxu0 0.0
        %503 = vmatprep.subr.mxu0 0.0
        %504 = vmatpush1.msra.mxu0 0.0
        %505 = vmatprep.subr.mxu0 0.0
        %506 = vmatpush1.msra.mxu0 0.0
        %507 = vmatprep.mubr.f32.mxu0 0.0
        %508 = vmatmul.mubr.f32.gmra.mrb[0].mxu0 %v323
        %v509 = vpop.f32.mrb[0].mxu0
        %v510 = vadd.f32 0.0, %v509
        %v511 = vpop.f32.mrb[0].mxu0
        %512 = vdwg.mxu0
        %513 = vst [vmem:[%s292] sm:$0xff] %v439
        %514 = vst [vmem:[%s299] sm:$0xff] %v441
        %515 = vst [vmem:[%s306] sm:$0xff] %v510
        %s516 = sand.u32 %s119, 1
        %s517 = scalar_lea.sflag [#allocation4], %s516
        %s518 = sand.u32 %s119, 1
        %s519 = smul.addr %s518, 8
        %s520 = scalar_lea.vmem [#allocation8], %s519
        %s521 = sand.u32 %s27, 1
        %s522 = scalar_lea.sflag [#allocation10], %s521
        %s523 = sand.u32 %s147, 1
        %s524 = smul.addr %s523, 8
        %s525 = scalar_lea.vmem [#allocation9], %s524
        %s526 = sand.u32 %s27, 1
        %s527 = scalar_lea.sflag [#allocation10], %s526
        %s528 = sand.u32 %s175, 1
        %s529 = smul.addr %s528, 8
        %s530 = scalar_lea.vmem [#allocation11], %s529
        // Predicated region
        $region45: #{tpu_custom_call.1} parent=31 // pred_check
          %p531 = pneg %p129
        $region46: #{tpu_custom_call.1} parent=31 // pred_check_branch
          %533 = sbr.rel (%p531) target = $region48
        $region47: #{tpu_custom_call.1} parent=31 // pred_region
          %s535 = ssub.s32 128, 128
          %536 = vsyncadd %s517, %s535
          %s537 = smul.addr %s31, 4
          %s538 = sadd.s32 %s32, %s537
          %s539 = smul.addr %s538, 128
          %s540 = scalar_lea.hbm %s3, %s539
          %s542 = sshll.u32 %s520, 4
          %s543 = int_to_ptr.vmem [resolvable:$true] %s542
          %545 = dma.vmem_to_hbm [thread:$0]  %s543, 128, %s540, %s517
        $region48: #{tpu_custom_call.1} parent=31 // pred_fallthru
          _
        // Predicated region
        $region49: #{tpu_custom_call.1} parent=31 // pred_check
          %p546 = pneg %p157
        $region50: #{tpu_custom_call.1} parent=31 // pred_check_branch
          %548 = sbr.rel (%p546) target = $region52
        $region51: #{tpu_custom_call.1} parent=31 // pred_region
          %s550 = ssub.s32 128, 128
          %551 = vsyncadd %s522, %s550
          %s552 = smul.addr %s31, 4
          %s553 = sadd.s32 %s32, %s552
          %s554 = smul.addr %s553, 128
          %s555 = scalar_lea.hbm %s4, %s554
          %s557 = sshll.u32 %s525, 4
          %s558 = int_to_ptr.vmem [resolvable:$true] %s557
          %560 = dma.vmem_to_hbm [thread:$0]  %s558, 128, %s555, %s522
        $region52: #{tpu_custom_call.1} parent=31 // pred_fallthru
          _
        // Predicated region
        $region53: #{tpu_custom_call.1} parent=31 // pred_check
          %p561 = pneg %p185
        $region54: #{tpu_custom_call.1} parent=31 // pred_check_branch
          %563 = sbr.rel (%p561) target = $region56
        $region55: #{tpu_custom_call.1} parent=31 // pred_region
          %s565 = ssub.s32 128, 128
          %566 = vsyncadd %s527, %s565
          %s567 = smul.addr %s31, 4
          %s568 = sadd.s32 %s32, %s567
          %s569 = smul.addr %s568, 128
          %s570 = scalar_lea.hbm %s5, %s569
          %s572 = sshll.u32 %s530, 4
          %s573 = int_to_ptr.vmem [resolvable:$true] %s572
          %575 = dma.vmem_to_hbm [thread:$0]  %s573, 128, %s570, %s527
        $region56: #{tpu_custom_call.1} parent=31 // pred_fallthru
          _
      $region32: #{tpu_custom_call.1} parent=5 // pred_fallthru
        _
      %p576 = scmp.le.s32.totalorder 2, %s22
      // Predicated region
      $region57: #{tpu_custom_call.1} parent=5 // pred_check
        %p577 = pneg %p576
      $region58: #{tpu_custom_call.1} parent=5 // pred_check_branch
        %579 = sbr.rel (%p577) target = $region60
      $region59: #{tpu_custom_call.1} parent=5 // pred_region
        %s580 = ssub.s32 %s22, 2
        // Predicated region
        $region61: #{tpu_custom_call.1} parent=59 // pred_check
          %p581 = pneg %p135
        $region62: #{tpu_custom_call.1} parent=59 // pred_check_branch
          %583 = sbr.rel (%p581) target = $region64
        $region63: #{tpu_custom_call.1} parent=59 // pred_region
          %s584 = sand.u32 %s120, 1
          %s585 = scalar_lea.sflag [#allocation4], %s584
          %s586 = sand.u32 %s120, 1
          %s587 = smul.addr %s586, 8
          %s588 = scalar_lea.vmem [#allocation8], %s587
          %589 = dma.done %s585, 128
        $region64: #{tpu_custom_call.1} parent=59 // pred_fallthru
          _
        // Predicated region
        $region65: #{tpu_custom_call.1} parent=59 // pred_check
          %p590 = pneg %p163
        $region66: #{tpu_custom_call.1} parent=59 // pred_check_branch
          %592 = sbr.rel (%p590) target = $region68
        $region67: #{tpu_custom_call.1} parent=59 // pred_region
          %s593 = sand.u32 %s28, 1
          %s594 = scalar_lea.sflag [#allocation10], %s593
          %s595 = sand.u32 %s148, 1
          %s596 = smul.addr %s595, 8
          %s597 = scalar_lea.vmem [#allocation9], %s596
          %598 = dma.done %s594, 128
        $region68: #{tpu_custom_call.1} parent=59 // pred_fallthru
          _
        // Predicated region
        $region69: #{tpu_custom_call.1} parent=59 // pred_check
          %p599 = pneg %p191
        $region70: #{tpu_custom_call.1} parent=59 // pred_check_branch
          %601 = sbr.rel (%p599) target = $region72
        $region71: #{tpu_custom_call.1} parent=59 // pred_region
          %s602 = sand.u32 %s28, 1
          %s603 = scalar_lea.sflag [#allocation10], %s602
          %s604 = sand.u32 %s176, 1
          %s605 = smul.addr %s604, 8
          %s606 = scalar_lea.vmem [#allocation11], %s605
          %607 = dma.done %s603, 128
        $region72: #{tpu_custom_call.1} parent=59 // pred_fallthru
          _
      $region60: #{tpu_custom_call.1} parent=5 // pred_fallthru
        _
    $region6: #{tpu_custom_call.1} parent=1 // loop_footer
      %s26 = sadd.s32 1, %s22
    $region7: #{tpu_custom_call.1} parent=1 // loop_footer_branch
      %21 = sbr.rel target = $region3
    $region8: #{tpu_custom_call.1} parent=1 // loop_exit
      _
    %608 = vsyncpa [#allocation3], 1
    %s609 = scalar_lea.sflag [#allocation3], 1
    %610 = vsyncpa %s609, 1
    %611 = vsyncpa [#allocation6], 1
    %612 = vsyncpa [#allocation4], 1
    %s613 = scalar_lea.sflag [#allocation4], 1
    %614 = vsyncpa %s613, 1
    %615 = vsyncpa [#allocation10], 1
    %s616 = scalar_lea.sflag [#allocation10], 1
    %617 = vsyncpa %s616, 1

</llo_original>
